<compile_context>
chip_gen: v5e
topology: v5e:2x2
jax: 0.10.0
libtpu: 0.0.40
codegen_flags: <defaults>
</compile_context>

<pallas_src>
import functools

import jax
import jax.numpy as jnp
from jax import lax
from jax.experimental import pallas as pl
from jax.experimental.pallas import tpu as pltpu


# ---------------------------------------------------------------------------
# Tile-sizing helpers
# ---------------------------------------------------------------------------

def _vmem_capacity_bytes():
    """Per-TensorCore VMEM capacity; conservative (v7x) fallback."""
    try:
        info = pltpu.get_tpu_info()
        cap = getattr(info, "vmem_capacity_bytes", None)
        if cap:
            return int(cap)
    except Exception:
        pass
    return 64 * 1024 * 1024


def _pick_tile(total, desired, align):
    """Tile along one axis: aligned, <= total, preferring >=2 grid steps so
    `dimension_semantics=("parallel",)` can use both v7x TensorCores."""
    if total <= align:
        return total                                   # single full-extent block
    desired = max(align, (desired // align) * align)
    if desired < total:
        return desired                                 # already >= 2 steps
    half = -(-total // 2)                              # split into 2 balanced tiles
    half = -(-half // align) * align
    return half if half < total else total


# ---------------------------------------------------------------------------
# Kernels
# ---------------------------------------------------------------------------

def _kl_rows_kernel(o1_ref, o2_ref, out_ref, *, batch, tile_b, ragged):
    """Classes on lanes. Blocks are (tile_b, C); softmax reduces over lanes.

    Writes this tile's partial KL sum into lane 0 of a lane-dense (1, 128) row.
    """
    x1 = o1_ref[...].astype(jnp.float32)   # in-kernel .float()
    x2 = o2_ref[...].astype(jnp.float32)

    m1 = jnp.max(x1, axis=1, keepdims=True)
    z1 = x1 - m1
    lse1 = jnp.log(jnp.sum(jnp.exp(z1), axis=1, keepdims=True))

    m2 = jnp.max(x2, axis=1, keepdims=True)
    z2 = x2 - m2
    e2 = jnp.exp(z2)
    s2 = jnp.sum(e2, axis=1, keepdims=True)
    num = jnp.sum(e2 * (z2 - z1), axis=1, keepdims=True)

    kl_row = num / s2 + lse1 - jnp.log(s2)                       # (tile_b, 1)

    if ragged:
        # Only the reduced per-row value is masked: garbage from the padded
        # tail rows stays contained in its own rows and is discarded here.
        row = (lax.broadcasted_iota(jnp.int32, kl_row.shape, 0)
               + pl.program_id(0) * tile_b)
        kl_row = jnp.where(row < batch, kl_row, 0.0)

    partial = jnp.sum(kl_row)                                    # scalar / tile
    lane = lax.broadcasted_iota(jnp.int32, (1, 128), 1)
    out_ref[...] = jnp.where(lane == 0, partial, 0.0)            # lane-dense st


def _kl_cols_kernel(o1_ref, o2_ref, out_ref, *, batch, tile_b, ragged):
    """Batch on lanes (inputs pre-transposed to (C, B)). Blocks are (C, tile_b).

    Emits per-example KL directly as a lane-dense (1, tile_b) row; the wrapper
    sums and applies the batchmean divide.
    """
    x1 = o1_ref[...].astype(jnp.float32)
    x2 = o2_ref[...].astype(jnp.float32)

    m1 = jnp.max(x1, axis=0, keepdims=True)
    z1 = x1 - m1
    lse1 = jnp.log(jnp.sum(jnp.exp(z1), axis=0, keepdims=True))

    m2 = jnp.max(x2, axis=0, keepdims=True)
    z2 = x2 - m2
    e2 = jnp.exp(z2)
    s2 = jnp.sum(e2, axis=0, keepdims=True)
    num = jnp.sum(e2 * (z2 - z1), axis=0, keepdims=True)

    kl = num / s2 + lse1 - jnp.log(s2)                           # (1, tile_b)
    if ragged:
        col = (lax.broadcasted_iota(jnp.int32, kl.shape, 1)
               + pl.program_id(0) * tile_b)
        kl = jnp.where(col < batch, kl, 0.0)
    out_ref[...] = kl


def _group_allreduce(x, combine, group):
    """All-reduce within aligned groups of `group` consecutive lanes.

    `group` must be a power of two dividing 128. log2(group) butterfly steps,
    each 2x pltpu.roll (XLU slot, slack) + 1 select + 1 combine (VPU).
    """
    lane = lax.broadcasted_iota(jnp.int32, x.shape, 1)
    width = x.shape[1]
    k = 1
    while k < group:
        fwd = pltpu.roll(x, shift=width - k, axis=1)   # value from lane i + k
        bwd = pltpu.roll(x, shift=k, axis=1)           # value from lane i - k
        x = combine(x, jnp.where((lane & k) == 0, fwd, bwd))
        k *= 2
    return x


def _kl_packed_kernel(o1_ref, o2_ref, out_ref, *, n_rows, tile_r, group, ragged):
    """Tiny-C path without a wrapper transpose.

    Inputs are free row-major reshapes of (B, C) -> (n_rows, 128); each lane
    row holds 128/group complete examples in contiguous groups of `group`
    lanes. Per-group softmax stats come from lane butterflies; the per-group
    constant (lse1 - log s2) is spread as 1/group per lane so a flat tile sum
    yields the exact per-example KL sum.
    """
    x1 = o1_ref[...].astype(jnp.float32)
    x2 = o2_ref[...].astype(jnp.float32)

    m1 = _group_allreduce(x1, jnp.maximum, group)
    z1 = x1 - m1
    s1 = _group_allreduce(jnp.exp(z1), jnp.add, group)

    m2 = _group_allreduce(x2, jnp.maximum, group)
    z2 = x2 - m2
    e2 = jnp.exp(z2)
    s2 = _group_allreduce(e2, jnp.add, group)

    r2 = 1.0 / s2                                       # exact (parity with torch)
    kl_lane = e2 * (z2 - z1) * r2 + jnp.log(s1 * r2) * (1.0 / group)

    kl_row = jnp.sum(kl_lane, axis=1, keepdims=True)    # (tile_r, 1)
    if ragged:
        row = (lax.broadcasted_iota(jnp.int32, kl_row.shape, 0)
               + pl.program_id(0) * tile_r)
        kl_row = jnp.where(row < n_rows, kl_row, 0.0)

    partial = jnp.sum(kl_row)
    lane = lax.broadcasted_iota(jnp.int32, (1, 128), 1)
    out_ref[...] = jnp.where(lane == 0, partial, 0.0)


# ---------------------------------------------------------------------------
# Wrapper
# ---------------------------------------------------------------------------

def rot_loss(outputs1, outputs2, *, batch_tile=None):
    """KLDivLoss('batchmean')(log_softmax(outputs1, 1), softmax(outputs2, 1)).

    Accepts any floating dtype (bf16/f32); cast to f32 happens in-kernel.
    `batch_tile` optionally overrides the batch-axis tile (testing / tuning).
    """
    assert outputs1.shape == outputs2.shape and outputs1.ndim == 2
    B, C = outputs1.shape
    itemsize = jnp.dtype(outputs1.dtype).itemsize
    sub_align = max(8, 32 // itemsize)          # 8 f32 / 16 bf16 / 32 int8-fp8

    cap = _vmem_capacity_bytes()
    # Keep (2 inputs x 2 pipeline buffers) + ~6-8 f32 tile-sized intermediates
    # well inside the per-TC VMEM (<= ~40 MiB on v7x, <= 56 MiB on v5e/v6e),
    # and raise the scoped limit so the compiler actually gets the headroom.
    budget = min((cap * 5) // 8, 56 * 1024 * 1024)
    vmem_limit = min((cap * 3) // 4, 96 * 1024 * 1024)
    params = pltpu.CompilerParams(dimension_semantics=("parallel",),
                                  vmem_limit_bytes=int(vmem_limit))

    # -- Tiny class count, reshape-friendly: packed-lane path (no transpose) --
    if C <= 32 and (C & (C - 1)) == 0 and (B * C) % 128 == 0:
        n_rows = (B * C) // 128
        o1 = jnp.reshape(outputs1, (n_rows, 128))   # free row-major reshape
        o2 = jnp.reshape(outputs2, (n_rows, 128))
        per_row = 2 * 2 * 128 * itemsize + 8 * 128 * 4
        desired = max(sub_align, min(4096, budget // per_row))
        if batch_tile is not None:
            desired = max(1, (batch_tile * C) // 128)
        tile_r = _pick_tile(n_rows, desired, sub_align)
        n_tiles = pl.cdiv(n_rows, tile_r)
        ragged = (n_rows % tile_r) != 0
        kernel = functools.partial(_kl_packed_kernel, n_rows=n_rows,
                                   tile_r=tile_r, group=C, ragged=ragged)
        out = pl.pallas_call(
            kernel,
            out_shape=jax.ShapeDtypeStruct((1, n_tiles * 128), jnp.float32),
            grid=(n_tiles,),
            in_specs=[
                pl.BlockSpec((tile_r, 128), lambda i: (i, 0)),
                pl.BlockSpec((tile_r, 128), lambda i: (i, 0)),
            ],
            out_specs=pl.BlockSpec((1, 128), lambda i: (0, i)),
            compiler_params=params,
        )(o1, o2)
        return jnp.sum(out) / jnp.float32(B)

    # -- Tiny class count, shape not reshape-friendly: transposed fallback ----
    if C <= 32:
        o1 = outputs1.T   # (C, B): batch on lanes for dense vregs
        o2 = outputs2.T
        per_col = 2 * 2 * C * itemsize + 6 * C * 4
        desired = max(128, min(32768, budget // per_col))
        if batch_tile is not None:
            desired = batch_tile
        tile = _pick_tile(B, desired, 128)
        n_tiles = pl.cdiv(B, tile)
        ragged = (B % tile) != 0
        kernel = functools.partial(_kl_cols_kernel, batch=B, tile_b=tile,
                                   ragged=ragged)
        out = pl.pallas_call(
            kernel,
            out_shape=jax.ShapeDtypeStruct((1, n_tiles * tile), jnp.float32),
            grid=(n_tiles,),
            in_specs=[
                pl.BlockSpec((C, tile), lambda i: (0, i)),
                pl.BlockSpec((C, tile), lambda i: (0, i)),
            ],
            out_specs=pl.BlockSpec((1, tile), lambda i: (0, i)),
            compiler_params=params,
        )(o1, o2)
        return jnp.sum(out) / jnp.float32(B)

    # -- General path: classes on lanes, tile the batch (sublane) axis --------
    per_row = 2 * 2 * C * itemsize + 6 * C * 4
    desired = max(sub_align, min(2048, budget // per_row))
    if batch_tile is not None:
        desired = batch_tile
    tile = _pick_tile(B, desired, sub_align)
    n_tiles = pl.cdiv(B, tile)
    ragged = (B % tile) != 0
    kernel = functools.partial(_kl_rows_kernel, batch=B, tile_b=tile,
                               ragged=ragged)
    out = pl.pallas_call(
        kernel,
        out_shape=jax.ShapeDtypeStruct((1, n_tiles * 128), jnp.float32),
        grid=(n_tiles,),
        in_specs=[
            pl.BlockSpec((tile, C), lambda i: (i, 0)),
            pl.BlockSpec((tile, C), lambda i: (i, 0)),
        ],
        out_specs=pl.BlockSpec((1, 128), lambda i: (0, i)),
        compiler_params=params,
    )(outputs1, outputs2)
    return jnp.sum(out) / jnp.float32(B)


# ---------------------------------------------------------------------------
# Reference + demo
# ---------------------------------------------------------------------------

def _reference(outputs1, outputs2):
    x1 = outputs1.astype(jnp.float32)
    x2 = outputs2.astype(jnp.float32)
    logp1 = jax.nn.log_softmax(x1, axis=1)
    p2 = jax.nn.softmax(x2, axis=1)
    logp2 = jax.nn.log_softmax(x2, axis=1)
    return jnp.sum(p2 * (logp2 - logp1)) / x1.shape[0]


def _check(name, loss, ref):
    jax.block_until_ready(loss)
    assert jnp.allclose(loss, ref, rtol=5e-3, atol=5e-3), (name, loss, ref)


if __name__ == "__main__":
    key = jax.random.PRNGKey(0)
    ks = jax.random.split(key, 12)

    # 1) Rotation-prediction shape (tiny C, odd B) -> transposed fallback.
    o1 = jax.random.normal(ks[0], (8, 4), dtype=jnp.float32)
    o2 = jax.random.normal(ks[1], (8, 4), dtype=jnp.float32)
    _check("case1", rot_loss(o1, o2), _reference(o1, o2))

    # 2) Tiny C, B not divisible by 32 -> transposed fallback, ragged tiles.
    o1 = jax.random.normal(ks[2], (200, 4), dtype=jnp.float32)
    o2 = jax.random.normal(ks[3], (200, 4), dtype=jnp.float32)
    _check("case2", rot_loss(o1, o2, batch_tile=128), _reference(o1, o2))

    # 3) Tiny C, B*C % 128 == 0 -> packed-lane (no-transpose) path, one block.
    o1 = jax.random.normal(ks[4], (256, 4), dtype=jnp.float32)
    o2 = jax.random.normal(ks[5], (256, 4), dtype=jnp.float32)
    _check("case3", rot_loss(o1, o2), _reference(o1, o2))

    # 4) Packed-lane path, bf16 inputs, multi-tile grid with a ragged last
    #    tile (exercises the butterfly reduce + reduced-level row mask).
    o1 = jax.random.normal(ks[6], (1600, 4), dtype=jnp.float32).astype(jnp.bfloat16)
    o2 = jax.random.normal(ks[7], (1600, 4), dtype=jnp.float32).astype(jnp.bfloat16)
    _check("case4", rot_loss(o1, o2, batch_tile=1024), _reference(o1, o2))

    # 5) Larger class count -> classes-on-lanes path, ragged multi-tile grid.
    o1 = jax.random.normal(ks[8], (40, 256), dtype=jnp.float32)
    o2 = jax.random.normal(ks[9], (40, 256), dtype=jnp.float32)
    _check("case5", rot_loss(o1, o2, batch_tile=16), _reference(o1, o2))

    # 6) Classes-on-lanes path, bf16, default tiling (forced >=2 grid steps).
    o1 = jax.random.normal(ks[10], (64, 256), dtype=jnp.float32).astype(jnp.bfloat16)
    o2 = jax.random.normal(ks[11], (64, 256), dtype=jnp.float32).astype(jnp.bfloat16)
    _check("case6", rot_loss(o1, o2), _reference(o1, o2))

    print("KERNEL_OK")
</pallas_src>

<mosaic_0001>
module attributes {stable_mosaic.version = 11 : i64} {
  func.func @_kl_cols_kernel(%arg0: i32, %arg1: memref<4x8xf32, #tpu.memory_space<vmem>>, %arg2: memref<4x8xf32, #tpu.memory_space<vmem>>, %arg3: memref<1x8xf32, #tpu.memory_space<vmem>>) attributes {dimension_semantics = [#tpu.dimension_semantics<parallel>], iteration_bounds = array<i64: 1>, scalar_prefetch = 0 : i64, scratch_operands = 0 : i64, tpu.core_type = #tpu.core_type<tc>, window_params = [{transform_indices = @transform_0, window_bounds = array<i64: 4, 8>}, {transform_indices = @transform_1, window_bounds = array<i64: 4, 8>}, {transform_indices = @transform_2, window_bounds = array<i64: 1, 8>}]} {
    %c0 = arith.constant 0 : index
    %c0_0 = arith.constant 0 : index
    %0 = vector.load %arg1[%c0, %c0_0] : memref<4x8xf32, #tpu.memory_space<vmem>>, vector<4x8xf32>
    %c0_1 = arith.constant 0 : index
    %c0_2 = arith.constant 0 : index
    %1 = vector.load %arg2[%c0_1, %c0_2] : memref<4x8xf32, #tpu.memory_space<vmem>>, vector<4x8xf32>
    %cst = arith.constant dense<0xFF800000> : vector<8xf32>
    %2 = vector.multi_reduction <maximumf>, %0, %cst [0] : vector<4x8xf32> to vector<8xf32>
    %3 = vector.shape_cast %2 : vector<8xf32> to vector<1x8xf32>
    %4 = vector.broadcast %3 : vector<1x8xf32> to vector<4x8xf32>
    %5 = arith.subf %0, %4 : vector<4x8xf32>
    %6 = math.exp %5 : vector<4x8xf32>
    %cst_3 = arith.constant dense<0.000000e+00> : vector<8xf32>
    %7 = vector.multi_reduction <add>, %6, %cst_3 [0] : vector<4x8xf32> to vector<8xf32>
    %8 = vector.shape_cast %7 : vector<8xf32> to vector<1x8xf32>
    %9 = math.log %8 : vector<1x8xf32>
    %cst_4 = arith.constant dense<0xFF800000> : vector<8xf32>
    %10 = vector.multi_reduction <maximumf>, %1, %cst_4 [0] : vector<4x8xf32> to vector<8xf32>
    %11 = vector.shape_cast %10 : vector<8xf32> to vector<1x8xf32>
    %12 = vector.broadcast %11 : vector<1x8xf32> to vector<4x8xf32>
    %13 = arith.subf %1, %12 : vector<4x8xf32>
    %14 = math.exp %13 : vector<4x8xf32>
    %cst_5 = arith.constant dense<0.000000e+00> : vector<8xf32>
    %15 = vector.multi_reduction <add>, %14, %cst_5 [0] : vector<4x8xf32> to vector<8xf32>
    %16 = vector.shape_cast %15 : vector<8xf32> to vector<1x8xf32>
    %17 = arith.subf %13, %5 : vector<4x8xf32>
    %18 = arith.mulf %14, %17 : vector<4x8xf32>
    %cst_6 = arith.constant dense<0.000000e+00> : vector<8xf32>
    %19 = vector.multi_reduction <add>, %18, %cst_6 [0] : vector<4x8xf32> to vector<8xf32>
    %20 = vector.shape_cast %19 : vector<8xf32> to vector<1x8xf32>
    %21 = arith.divf %20, %16 : vector<1x8xf32>
    %22 = arith.addf %21, %9 : vector<1x8xf32>
    %23 = math.log %16 : vector<1x8xf32>
    %24 = arith.subf %22, %23 : vector<1x8xf32>
    %c0_7 = arith.constant 0 : index
    %c0_8 = arith.constant 0 : index
    %25 = vector.load %arg3[%c0_7, %c0_8] : memref<1x8xf32, #tpu.memory_space<vmem>>, vector<1x8xf32>
    tpu.vector_store %arg3[%c0_7, %c0_8], %24 {strides = array<i32>} : memref<1x8xf32, #tpu.memory_space<vmem>>, vector<1x8xf32>,
    return
  }
  func.func @transform_0(%arg0: i32) -> (i32, i32) {
    %c0_i32 = arith.constant 0 : i32
    %c0_i32_0 = arith.constant 0 : i32
    return %c0_i32, %arg0 : i32, i32
  }
  func.func @transform_1(%arg0: i32) -> (i32, i32) {
    %c0_i32 = arith.constant 0 : i32
    %c0_i32_0 = arith.constant 0 : i32
    return %c0_i32, %arg0 : i32, i32
  }
  func.func @transform_2(%arg0: i32) -> (i32, i32) {
    %c0_i32 = arith.constant 0 : i32
    %c0_i32_0 = arith.constant 0 : i32
    return %c0_i32, %arg0 : i32, i32
  }
}

</mosaic_0001>

<llo_original>
// kernel: tpu_custom_call.1
$region0: #{tpu_custom_call.1}
  #allocation0 [shape = 'u32[]', space=smem, size = 0x4, offset = 0x4, fixed_abs, tag = 'smem constant byte address 0x4 - core index']
  #allocation1 [shape = 'u32[72,128]{1,0:T(1,128)}', space=vmem, size = 0x9000, scoped, tag = 'internal scratch']
  %s0 = inlined_call_operand.hbm [shape: f32[4,8], index: 0, kind: input, shape index: {}]
  %s1 = inlined_call_operand.hbm [shape: f32[4,8], index: 1, kind: input, shape index: {}]
  %s2 = inlined_call_operand.hbm [shape: f32[1,8], index: 2, kind: output, shape index: {}]
  %s3 = sld [smem:[#allocation0]]
  $region26: #{tpu_custom_call.1} parent=0
    _
  %s5 = ssub.s32 1, %s3
  %s6 = scalar_select 0, %s5, %s3
  $region1: #{tpu_custom_call.1} parent=0
    #allocation2 [shape = 'u8[2048]{0}', space=vmem, size = 0x800, scoped, tag = 'input window, operand 0, single buffered']
    #allocation3 [shape = 's32[1]{0}', space=sflag, size = 0x4, scoped, tag = 'scoped memory for tpu_custom_call.1']
    #allocation4 [shape = 's32[1]{0}', space=sflag, size = 0x4, scoped, tag = 'scoped memory for tpu_custom_call.1']
    #allocation5 [shape = 'u8[2048]{0}', space=vmem, size = 0x800, scoped, tag = 'input window, operand 1, single buffered']
    #allocation6 [shape = 's32[1]{0}', space=sflag, size = 0x4, scoped, tag = 'scoped memory for tpu_custom_call.1']
    #allocation7 [shape = 'u8[512]{0}', space=vmem, size = 0x400, scoped, tag = 'output window, operand 0, single buffered']
    %7 = vsyncpa [#allocation3], 0
    %8 = vsyncpa [#allocation6], 0
    %9 = vsyncpa [#allocation4], 0
    // Predicated region
    $region2: #{tpu_custom_call.1} parent=1 // pred_check
      _
    $region3: #{tpu_custom_call.1} parent=1 // pred_check_branch
      %11 = sbr.rel (0) target = $region5
    $region4: #{tpu_custom_call.1} parent=1 // pred_region
      %13 = vsyncadd [#allocation3], 0
      %s15 = sshll.u32 %s0, 4
      %s16 = int_to_ptr.hbm [resolvable:$true] %s15
      %s17 = sshll.u32 [#allocation2], 4
      %s18 = int_to_ptr.vmem [resolvable:$true] %s17
      %20 = dma.hbm_to_vmem [thread:$0]  %s16, 64, %s18, [#allocation3]
    $region5: #{tpu_custom_call.1} parent=1 // pred_fallthru
      _
    // Predicated region
    $region6: #{tpu_custom_call.1} parent=1 // pred_check
      _
    $region7: #{tpu_custom_call.1} parent=1 // pred_check_branch
      %22 = sbr.rel (0) target = $region9
    $region8: #{tpu_custom_call.1} parent=1 // pred_region
      %24 = vsyncadd [#allocation6], 0
      %s26 = sshll.u32 %s1, 4
      %s27 = int_to_ptr.hbm [resolvable:$true] %s26
      %s28 = sshll.u32 [#allocation5], 4
      %s29 = int_to_ptr.vmem [resolvable:$true] %s28
      %31 = dma.hbm_to_vmem [thread:$0]  %s27, 64, %s29, [#allocation6]
    $region9: #{tpu_custom_call.1} parent=1 // pred_fallthru
      _
    // Predicated region
    $region10: #{tpu_custom_call.1} parent=1 // pred_check
      _
    $region11: #{tpu_custom_call.1} parent=1 // pred_check_branch
      %33 = sbr.rel (0) target = $region13
    $region12: #{tpu_custom_call.1} parent=1 // pred_region
      %35 = dma.done [#allocation3], 64
    $region13: #{tpu_custom_call.1} parent=1 // pred_fallthru
      _
    // Predicated region
    $region14: #{tpu_custom_call.1} parent=1 // pred_check
      _
    $region15: #{tpu_custom_call.1} parent=1 // pred_check_branch
      %37 = sbr.rel (0) target = $region17
    $region16: #{tpu_custom_call.1} parent=1 // pred_region
      %39 = dma.done [#allocation6], 64
    $region17: #{tpu_custom_call.1} parent=1 // pred_fallthru
      _
    %v40 = vld [vmem:[#allocation2] sm:$0xf]
    %v41 = vld [vmem:[#allocation5] sm:$0xf]
    %vm42 = vcmask 60416
    %v43 = vsel %vm42, %v40, -inf
    %v44 = vrot.slane %v43, 4
    %v45 = vmax.f32 %v43, %v44
    %v46 = vrot.slane %v45, 2
    %v47 = vmax.f32 %v45, %v46
    %v48 = vrot.slane %v47, 1
    %v49 = vmax.f32 %v47, %v48
    %v50 = vsub.f32 %v40, %v49
    %v51 = vmul.f32 %v50, 1.442695
    %v52 = vpow.pop %v51
    %v53 = vsel %vm42, %v52, 0.0
    %v54 = vrot.slane %v53, 4
    %v55 = vadd.f32 %v53, %v54
    %v56 = vrot.slane %v55, 2
    %v57 = vadd.f32 %v55, %v56
    %v58 = vrot.slane %v57, 1
    %v59 = vadd.f32 %v57, %v58
    %v60 = vlog2.pop %v59
    %v61 = vmul.f32 %v60, 0.6931472
    %v62 = vsel %vm42, %v41, -inf
    %v63 = vrot.slane %v62, 4
    %v64 = vmax.f32 %v62, %v63
    %v65 = vrot.slane %v64, 2
    %v66 = vmax.f32 %v64, %v65
    %v67 = vrot.slane %v66, 1
    %v68 = vmax.f32 %v66, %v67
    %v69 = vsub.f32 %v41, %v68
    %v70 = vmul.f32 %v69, 1.442695
    %v71 = vpow.pop %v70
    %v72 = vsel %vm42, %v71, 0.0
    %v73 = vrot.slane %v72, 4
    %v74 = vadd.f32 %v72, %v73
    %v75 = vrot.slane %v74, 2
    %v76 = vadd.f32 %v74, %v75
    %v77 = vrot.slane %v76, 1
    %v78 = vadd.f32 %v76, %v77
    %v79 = vsub.f32 %v69, %v50
    %v80 = vmul.f32 %v71, %v79
    %v81 = vsel %vm42, %v80, 0.0
    %v82 = vrot.slane %v81, 4
    %v83 = vadd.f32 %v81, %v82
    %v84 = vrot.slane %v83, 2
    %v85 = vadd.f32 %v83, %v84
    %v86 = vrot.slane %v85, 1
    %v87 = vadd.f32 %v85, %v86
    %v88 = vrcp.pop %v78
    %v89 = vmul.f32 %v78, %v88
    %v90 = vsub.f32 1.0, %v89
    %v91 = vmul.f32 %v88, %v90
    %v92 = vadd.f32 %v88, %v91
    %vm93 = vweird.f32 %v78
    %vm94 = vweird.f32 %v88
    %vm95 = vmor %vm93, %vm94
    %v96 = vsel %vm95, %v88, %v92
    %v97 = vand.u32 2147483647, %v78
    %vm98 = vcmp.eq.f32.partialorder %v97, 8.507059e+37
    %v99 = vand.u32 %v78, 2147483648
    %v100 = vor.u32 1.1754944e-38, %v99
    %v101 = vsel %vm98, %v100, %v96
    %v102 = vmul.f32 %v87, %v101
    %v103 = vadd.f32 %v102, %v61
    %v104 = vlog2.pop %v78
    %v105 = vmul.f32 %v104, 0.6931472
    %v106 = vsub.f32 %v103, %v105
    %vm107 = vcmask 57344
    %108 = vst.msk [vmem:[#allocation7] sm:$0x1] %vm107, %v106
    // Predicated region
    $region18: #{tpu_custom_call.1} parent=1 // pred_check
      _
    $region19: #{tpu_custom_call.1} parent=1 // pred_check_branch
      %110 = sbr.rel (0) target = $region21
    $region20: #{tpu_custom_call.1} parent=1 // pred_region
      %112 = vsyncadd [#allocation4], 0
      %s114 = sshll.u32 [#allocation7], 4
      %s115 = int_to_ptr.vmem [resolvable:$true] %s114
      %s116 = sshll.u32 %s2, 4
      %s117 = int_to_ptr.hbm [resolvable:$true] %s116
      %119 = dma.vmem_to_hbm [thread:$0]  %s115, 16, %s117, [#allocation4]
    $region21: #{tpu_custom_call.1} parent=1 // pred_fallthru
      _
    // Predicated region
    $region22: #{tpu_custom_call.1} parent=1 // pred_check
      _
    $region23: #{tpu_custom_call.1} parent=1 // pred_check_branch
      %121 = sbr.rel (0) target = $region25
    $region24: #{tpu_custom_call.1} parent=1 // pred_region
      %123 = dma.done [#allocation4], 16
    $region25: #{tpu_custom_call.1} parent=1 // pred_fallthru
      _
    %124 = vsyncpa [#allocation3], 1
    %125 = vsyncpa [#allocation6], 1
    %126 = vsyncpa [#allocation4], 1

</llo_original>
